<compile_context>
chip_gen: v7x
topology: tpu7x:2x2x1
jax: 0.10.0
libtpu: 0.0.40
codegen_flags: <defaults>
</compile_context>

<pallas_src>
import functools

import jax
import jax.numpy as jnp
from jax.experimental import pallas as pl
from jax.experimental.pallas import tpu as pltpu

_CHUNK = 128                 # lane width
_VPU_MATVEC_MAX_C = 32       # <= this C the matvec stays on the VPU
_PACK_BLOCK_BYTES = 4 << 20  # target per-grid-step block size for batch packing
_MAX_PACK_NB = 16            # max batch elements packed per grid step


# ---------------------------------------------------------------------------
# helpers
# ---------------------------------------------------------------------------

def _round_up(x, m):
    return ((x + m - 1) // m) * m


def _vmem_budget_and_cores():
    """Generation-aware scoped-VMEM budget + 'chip has >1 TensorCore' flag."""
    vmem_limit = 32 << 20            # safe scoped default on every generation
    multicore = False
    try:
        info = pltpu.get_tpu_info()
        cap = int(info.vmem_capacity_bytes)
        if cap >= (32 << 20):
            # ~96 MiB on 128-MiB parts (v5e/v6e/v5p), ~48 MiB on 64-MiB v7x.
            vmem_limit = max(32 << 20, min(int(0.75 * cap), cap - (16 << 20)))
        cores = None
        for attr in ("num_cores", "core_count", "num_tensorcores",
                     "tensorcores_per_chip"):
            v = getattr(info, attr, None)
            if v is not None:
                cores = int(v)
                break
        # v7x heuristic: 2 TCs per chip and 64 MiB VMEM per TC.
        multicore = (cores > 1) if cores is not None else (cap <= (64 << 20))
    except Exception:
        pass
    return vmem_limit, multicore


def _pick_batch_tile(n, per_elem_bytes, *, max_block_bytes, multicore, max_nb):
    """Pack batch elements per grid step (amortize ~0.35us/step overhead).

    On multi-TC chips (v7x) keep >= 2 grid steps and prefer an even step count
    so both TensorCores stay busy; on single-core chips just take the largest
    block that fits the packing budget.
    """
    cands = [c for c in range(1, max(1, min(n, max_nb)) + 1)
             if n % c == 0 and c * per_elem_bytes <= max_block_bytes]
    if not cands:
        return 1
    if multicore:
        two_step = [c for c in cands if n // c >= 2]
        if two_step:
            cands = two_step
        even = [c for c in cands if (n // c) % 2 == 0]
        if even:
            cands = even
    return max(cands)


def _spatial_max_3d(x_ref, *, valid_upto=None, tile_base=0):
    """Per-(row, channel) max over the lane (last) axis of a 3-D ref view.

    VPU max-accumulate over 128-lane chunks inside a fori_loop (bounded live
    range, no unroll cap), then a single cross-lane XLU reduce.  If valid_upto
    is given, lanes whose global position (tile_base + local lane) >= valid_upto
    are masked out first (ragged last tile).  Returns x_ref.shape[:-1] in the
    ref's dtype (max of raw values is exact in any dtype).
    """
    hw_tile = x_ref.shape[-1]
    dtype = x_ref.dtype
    if jnp.issubdtype(dtype, jnp.floating):
        neg = -float("inf")
    else:
        neg = int(jnp.iinfo(dtype).min)

    def _mask(v, start):
        if valid_upto is None:
            return v
        lane = jax.lax.broadcasted_iota(jnp.int32, v.shape, v.ndim - 1)
        keep = (tile_base + start + lane) < valid_upto
        return jnp.where(keep, v, jnp.asarray(neg, dtype))

    nchunks = hw_tile // _CHUNK
    if hw_tile % _CHUNK == 0 and nchunks > 1:
        def body(k, acc):
            start = k * _CHUNK
            chunk = x_ref[:, :, pl.ds(pl.multiple_of(start, _CHUNK), _CHUNK)]
            return jnp.maximum(acc, _mask(chunk, start))

        acc0 = jnp.full(x_ref.shape[:-1] + (_CHUNK,), neg, dtype)
        acc = jax.lax.fori_loop(0, nchunks, body, acc0, unroll=min(8, nchunks))
        return jnp.max(acc, axis=-1)
    return jnp.max(_mask(x_ref[...], 0), axis=-1)


def _conv1x1_matvec(g, w, use_mxu):
    """scale[n, d] = sum_c g[n, c] * w[d, c];  g: (nb, C) f32, w: (C, C) f32."""
    if not use_mxu:
        # tiny C: exact f32 VPU multiply + one lane reduce (small intermediate)
        return jnp.sum(g[:, None, :] * w[None, :, :], axis=-1)
    # larger C: MXU matvec.  bf16 hi/lo split (bf16x3 passes, f32 accumulate)
    # keeps ~f32 accuracy without relying on matmul precision flags.
    dims = (((1,), (1,)), ((), ()))

    def _split(a):
        hi = a.astype(jnp.bfloat16)
        lo = (a - hi.astype(jnp.float32)).astype(jnp.bfloat16)
        return hi, lo

    def _mm(a, b):
        return jax.lax.dot_general(a, b, dims,
                                   preferred_element_type=jnp.float32)

    g_hi, g_lo = _split(g)
    w_hi, w_lo = _split(w)
    return _mm(g_hi, w_hi) + _mm(g_hi, w_lo) + _mm(g_lo, w_hi)


# ---------------------------------------------------------------------------
# kernels
# ---------------------------------------------------------------------------

def _single_pass_kernel(x_ref, w_ref, b_ref, o_ref, *, use_mxu):
    # sigmoid is strictly monotone -> pool the raw activations, sigmoid the
    # tiny pooled vector (no full-tensor transcendentals).
    pooled = _spatial_max_3d(x_ref)                              # (nb, C)
    g = jax.nn.sigmoid(pooled.astype(jnp.float32))               # (nb, C)
    w = w_ref[...].astype(jnp.float32)                           # (C, C)  w[out, in]
    b = b_ref[...].astype(jnp.float32)                           # (1, C)
    scale = _conv1x1_matvec(g, w, use_mxu) + b                   # (nb, C) f32
    # multiply in f32 and cast the product (matches the f32 reference / torch)
    o_ref[...] = (x_ref[...].astype(jnp.float32)
                  * scale[:, :, None]).astype(o_ref.dtype)


def _pooled_scale_kernel(x_ref, w_ref, b_ref, s_ref, *, hw, use_mxu, ragged):
    """Two-pass path, pass 1: accumulate the per-channel max of x over HW
    tiles in the resident (1, C, 1) output block; on the last tile turn it
    into the per-image scale = conv1x1(sigmoid(max)) + bias."""
    h = pl.program_id(1)
    thw = x_ref.shape[-1]
    c = s_ref.shape[1]

    @pl.when(h == 0)
    def _():
        s_ref[...] = jnp.full(s_ref.shape, -jnp.inf, s_ref.dtype)

    tmax = _spatial_max_3d(x_ref,
                           valid_upto=hw if ragged else None,
                           tile_base=h * thw)                    # (1, C)
    s_ref[...] = jnp.maximum(s_ref[...],
                             tmax.astype(jnp.float32).reshape(1, c, 1))

    @pl.when(h == pl.num_programs(1) - 1)
    def _():
        g = jax.nn.sigmoid(s_ref[...].reshape(1, c))             # (1, C)
        w = w_ref[...].astype(jnp.float32)
        b = b_ref[...].astype(jnp.float32)
        scale = _conv1x1_matvec(g, w, use_mxu) + b               # (1, C)
        s_ref[...] = scale.reshape(1, c, 1)


def _scale_mul_kernel(x_ref, s_ref, o_ref):
    """Two-pass path, pass 2: broadcast multiply, lane-dense store."""
    o_ref[...] = (x_ref[...].astype(jnp.float32) * s_ref[...]).astype(o_ref.dtype)


# ---------------------------------------------------------------------------
# wrappers
# ---------------------------------------------------------------------------

def _single_pass_call(x3, weight, b_row, *, N, C, HW, itemsize, vmem_limit,
                      use_mxu, multicore):
    per_elem = C * HW * itemsize
    # cap packing so the fori max-accumulator (nb, C, 128) stays ~<= 32 vregs
    acc_cap = max(1, (128 << 10) // max(1, C * _CHUNK * itemsize))
    nb = _pick_batch_tile(N, per_elem,
                          max_block_bytes=_PACK_BLOCK_BYTES,
                          multicore=multicore,
                          max_nb=min(_MAX_PACK_NB, acc_cap))
    wb = int(jnp.dtype(weight.dtype).itemsize)
    return pl.pallas_call(
        functools.partial(_single_pass_kernel, use_mxu=use_mxu),
        out_shape=jax.ShapeDtypeStruct((N, C, HW), x3.dtype),
        grid_spec=pltpu.PrefetchScalarGridSpec(
            num_scalar_prefetch=0,
            grid=(N // nb,),
            in_specs=[
                pl.BlockSpec((nb, C, HW), lambda n: (n, 0, 0)),
                pl.BlockSpec((C, C), lambda n: (0, 0)),
                pl.BlockSpec((1, C), lambda n: (0, 0)),
            ],
            out_specs=pl.BlockSpec((nb, C, HW), lambda n: (n, 0, 0)),
        ),
        compiler_params=pltpu.CompilerParams(
            dimension_semantics=("parallel",),
            vmem_limit_bytes=vmem_limit),
        cost_estimate=pl.CostEstimate(
            flops=int(2 * N * C * HW + 2 * N * C * C),
            transcendentals=int(N * C),
            bytes_accessed=int(2 * N * C * HW * itemsize + (C * C + C) * wb)),
    )(x3, weight, b_row)


def _two_pass_call(x3, weight, b_row, *, N, C, HW, itemsize, vmem_limit,
                   use_mxu, hw_tile):
    # HW tile: lane-dense multiple of 128, ~4 MiB of input per tile, capped so
    # pass 2's double-buffered in + out blocks fit the VMEM budget.
    max_tile_bytes = max(_CHUNK * C * itemsize, (vmem_limit - (4 << 20)) // 5)
    tile_bytes = min(_PACK_BLOCK_BYTES, max_tile_bytes)
    thw = max(_CHUNK, (tile_bytes // max(1, C * itemsize)) // _CHUNK * _CHUNK)
    if hw_tile is not None:
        thw = max(_CHUNK, (hw_tile // _CHUNK) * _CHUNK)
    thw = min(thw, _round_up(HW, _CHUNK))
    n_hw = pl.cdiv(HW, thw)
    ragged = (HW % thw) != 0
    wb = int(jnp.dtype(weight.dtype).itemsize)
    # TODO(synk): add channel tiling for C so large that even a (1, C, 128)
    # strip (x5 double-buffered) exceeds the per-generation VMEM budget.

    # Pass 1: per-channel max accumulated over HW tiles -> per-image scale.
    scale = pl.pallas_call(
        functools.partial(_pooled_scale_kernel, hw=HW, use_mxu=use_mxu,
                          ragged=ragged),
        out_shape=jax.ShapeDtypeStruct((N, C, 1), jnp.float32),
        grid_spec=pltpu.PrefetchScalarGridSpec(
            num_scalar_prefetch=0,
            grid=(N, n_hw),
            in_specs=[
                pl.BlockSpec((1, C, thw), lambda n, h: (n, 0, h)),
                pl.BlockSpec((C, C), lambda n, h: (0, 0)),
                pl.BlockSpec((1, C), lambda n, h: (0, 0)),
            ],
            out_specs=pl.BlockSpec((1, C, 1), lambda n, h: (n, 0, 0)),
        ),
        compiler_params=pltpu.CompilerParams(
            dimension_semantics=("parallel", "arbitrary"),
            vmem_limit_bytes=vmem_limit),
        cost_estimate=pl.CostEstimate(
            flops=int(N * C * HW + 2 * N * C * C),
            transcendentals=int(N * C),
            bytes_accessed=int(N * C * HW * itemsize + (C * C + C) * wb
                               + N * C * 4)),
    )(x3, weight, b_row)

    # Pass 2: re-stream x tile-by-tile and apply the broadcast multiply.
    return pl.pallas_call(
        _scale_mul_kernel,
        out_shape=jax.ShapeDtypeStruct((N, C, HW), x3.dtype),
        grid_spec=pltpu.PrefetchScalarGridSpec(
            num_scalar_prefetch=0,
            grid=(N, n_hw),
            in_specs=[
                pl.BlockSpec((1, C, thw), lambda n, h: (n, 0, h)),
                pl.BlockSpec((1, C, 1), lambda n, h: (n, 0, 0)),
            ],
            out_specs=pl.BlockSpec((1, C, thw), lambda n, h: (n, 0, h)),
        ),
        compiler_params=pltpu.CompilerParams(
            dimension_semantics=("parallel", "parallel"),
            vmem_limit_bytes=vmem_limit),
        cost_estimate=pl.CostEstimate(
            flops=int(N * C * HW),
            transcendentals=0,
            bytes_accessed=int(2 * N * C * HW * itemsize + N * C * 4)),
    )(x3, scale)


def max_channel(x, weight, bias, *, force_two_pass=False, hw_tile=None):
    """Forward of Max_channel:  x * (conv1x1(maxpool(sigmoid(x))))

    x: (N, C, H, W); weight: (C, C) = conv weight[:, :, 0, 0]; bias: (C,)
    """
    N, C, H, W = x.shape
    HW = H * W
    itemsize = jnp.dtype(x.dtype).itemsize

    x3 = x.reshape(N, C, HW)              # lane-dense: H*W on the lane axis
    b_row = bias.reshape(1, C)
    use_mxu = C > _VPU_MATVEC_MAX_C

    vmem_limit, multicore = _vmem_budget_and_cores()

    per_elem = C * HW * itemsize
    param_bytes = (C * C + C) * int(jnp.dtype(weight.dtype).itemsize)
    # single pass needs double-buffered in + out blocks (+ params + headroom)
    fits_single = 4 * per_elem + param_bytes + (2 << 20) <= vmem_limit
    # a 1-step grid has zero DMA/compute pipelining (and idles one v7x TC):
    # route large N==1 maps through the HW-tiled two-pass path instead.
    want_hw_pipeline = (N == 1) and (per_elem >= (8 << 20))

    if force_two_pass or (not fits_single) or want_hw_pipeline:
        out3 = _two_pass_call(x3, weight, b_row, N=N, C=C, HW=HW,
                              itemsize=itemsize, vmem_limit=vmem_limit,
                              use_mxu=use_mxu, hw_tile=hw_tile)
    else:
        out3 = _single_pass_call(x3, weight, b_row, N=N, C=C, HW=HW,
                                 itemsize=itemsize, vmem_limit=vmem_limit,
                                 use_mxu=use_mxu, multicore=multicore)
    return out3.reshape(N, C, H, W)


# ---------------------------------------------------------------------------
# pure-JAX reference + self-test
# ---------------------------------------------------------------------------

def max_channel_reference(x, weight, bias):
    xf = x.astype(jnp.float32)
    pooled = jnp.max(jax.nn.sigmoid(xf), axis=(2, 3))                   # (N, C)
    scale = jnp.sum(pooled[:, None, :] * weight[None].astype(jnp.float32),
                    axis=-1) + bias[None].astype(jnp.float32)           # (N, C)
    return (xf * scale[:, :, None, None]).astype(x.dtype)


if __name__ == "__main__":
    keys = jax.random.split(jax.random.PRNGKey(0), 9)

    def conv1x1_params(kw, kb, c):
        # torch.nn.Conv2d default init bounds (fan_in = c for a 1x1 conv)
        bound = 1.0 / (c ** 0.5)
        w = jax.random.uniform(kw, (c, c), jnp.float32, -bound, bound)
        b = jax.random.uniform(kb, (c,), jnp.float32, -bound, bound)
        return w, b

    # --- case 1: default single-pass path, small C (VPU matvec) -------------
    N, C, H, W = 2, 4, 16, 16
    x = jax.random.normal(keys[0], (N, C, H, W), jnp.float32)
    w, b = conv1x1_params(keys[1], keys[2], C)
    out = jax.block_until_ready(max_channel(x, w, b))
    ref = max_channel_reference(x, w, b)
    assert out.shape == x.shape
    assert jnp.allclose(out, ref, atol=1e-5, rtol=1e-5), "single-pass mismatch"

    # --- case 2: two-pass HW-tiled path (ragged tiles, N == 1) --------------
    N, C, H, W = 1, 8, 20, 20            # H*W = 400 -> 2 tiles of 256, ragged
    x = jax.random.normal(keys[3], (N, C, H, W), jnp.float32)
    w, b = conv1x1_params(keys[4], keys[5], C)
    out = jax.block_until_ready(
        max_channel(x, w, b, force_two_pass=True, hw_tile=256))
    ref = max_channel_reference(x, w, b)
    assert jnp.allclose(out, ref, atol=1e-5, rtol=1e-5), "two-pass mismatch"

    # --- case 3: larger C -> MXU (bf16x3) matvec branch ---------------------
    N, C, H, W = 2, 64, 16, 16
    x = jax.random.normal(keys[6], (N, C, H, W), jnp.float32)
    w, b = conv1x1_params(keys[7], keys[8], C)
    out = jax.block_until_ready(max_channel(x, w, b))
    ref = max_channel_reference(x, w, b)
    assert jnp.allclose(out, ref, atol=1e-3, rtol=1e-3), "mxu matvec mismatch"

    print("KERNEL_OK")
</pallas_src>

<mosaic_0001>
module attributes {stable_mosaic.version = 11 : i64} {
  func.func @_single_pass_kernel(%arg0: i32, %arg1: memref<2x4x256xf32, #tpu.memory_space<vmem>>, %arg2: memref<4x4xf32, #tpu.memory_space<vmem>>, %arg3: memref<1x4xf32, #tpu.memory_space<vmem>>, %arg4: memref<2x4x256xf32, #tpu.memory_space<vmem>>) attributes {dimension_semantics = [#tpu.dimension_semantics<parallel>], iteration_bounds = array<i64: 1>, scalar_prefetch = 0 : i64, scratch_operands = 0 : i64, tpu.core_type = #tpu.core_type<tc>, window_params = [{transform_indices = @transform_0, window_bounds = array<i64: 2, 4, 256>}, {pipeline_mode = #tpu.pipeline_mode<synchronous>, transform_indices = @transform_1, window_bounds = array<i64: 4, 4>}, {pipeline_mode = #tpu.pipeline_mode<synchronous>, transform_indices = @transform_2, window_bounds = array<i64: 1, 4>}, {transform_indices = @transform_3, window_bounds = array<i64: 2, 4, 256>}]} {
    %cst = arith.constant 0xFF800000 : f32
    %0 = vector.broadcast %cst : f32 to vector<2x4x128xf32>
    %c0_i32 = arith.constant 0 : i32
    %c128_i32 = arith.constant 128 : i32
    %1 = arith.muli %c0_i32, %c128_i32 : i32
    %2 = tpu.assume_multiple %1, 128 : i32
    %c0 = arith.constant 0 : index
    %c0_0 = arith.constant 0 : index
    %3 = arith.index_cast %2 : i32 to index
    %4 = vector.load %arg1[%c0, %c0_0, %3] : memref<2x4x256xf32, #tpu.memory_space<vmem>>, vector<2x4x128xf32>
    %5 = arith.maximumf %0, %4 : vector<2x4x128xf32>
    %c1_i32 = arith.constant 1 : i32
    %c128_i32_1 = arith.constant 128 : i32
    %6 = arith.muli %c1_i32, %c128_i32_1 : i32
    %7 = tpu.assume_multiple %6, 128 : i32
    %c0_2 = arith.constant 0 : index
    %c0_3 = arith.constant 0 : index
    %8 = arith.index_cast %7 : i32 to index
    %9 = vector.load %arg1[%c0_2, %c0_3, %8] : memref<2x4x256xf32, #tpu.memory_space<vmem>>, vector<2x4x128xf32>
    %10 = arith.maximumf %5, %9 : vector<2x4x128xf32>
    %c2_i32 = arith.constant 2 : i32
    %cst_4 = arith.constant dense<0xFF800000> : vector<2x4xf32>
    %11 = vector.multi_reduction <maximumf>, %10, %cst_4 [2] : vector<2x4x128xf32> to vector<2x4xf32>
    %12 = arith.negf %11 : vector<2x4xf32>
    %13 = math.exp %12 : vector<2x4xf32>
    %cst_5 = arith.constant 1.000000e+00 : f32
    %14 = vector.broadcast %cst_5 : f32 to vector<2x4xf32>
    %15 = arith.addf %14, %13 : vector<2x4xf32>
    %16 = arith.divf %14, %15 : vector<2x4xf32>
    %c0_6 = arith.constant 0 : index
    %c0_7 = arith.constant 0 : index
    %17 = vector.load %arg2[%c0_6, %c0_7] : memref<4x4xf32, #tpu.memory_space<vmem>>, vector<4x4xf32>
    %c0_8 = arith.constant 0 : index
    %c0_9 = arith.constant 0 : index
    %18 = vector.load %arg3[%c0_8, %c0_9] : memref<1x4xf32, #tpu.memory_space<vmem>>, vector<1x4xf32>
    %19 = vector.shape_cast %16 : vector<2x4xf32> to vector<2x1x4xf32>
    %20 = vector.shape_cast %17 : vector<4x4xf32> to vector<1x4x4xf32>
    %21 = vector.broadcast %19 : vector<2x1x4xf32> to vector<2x4x4xf32>
    %22 = vector.broadcast %20 : vector<1x4x4xf32> to vector<2x4x4xf32>
    %23 = arith.mulf %21, %22 : vector<2x4x4xf32>
    %cst_10 = arith.constant dense<0.000000e+00> : vector<2x4xf32>
    %24 = vector.multi_reduction <add>, %23, %cst_10 [2] : vector<2x4x4xf32> to vector<2x4xf32>
    %25 = vector.broadcast %18 : vector<1x4xf32> to vector<2x4xf32>
    %26 = arith.addf %24, %25 : vector<2x4xf32>
    %c0_11 = arith.constant 0 : index
    %c0_12 = arith.constant 0 : index
    %c0_13 = arith.constant 0 : index
    %27 = vector.load %arg1[%c0_11, %c0_12, %c0_13] : memref<2x4x256xf32, #tpu.memory_space<vmem>>, vector<2x4x256xf32>
    %28 = vector.shape_cast %26 : vector<2x4xf32> to vector<2x4x1xf32>
    %29 = vector.broadcast %28 : vector<2x4x1xf32> to vector<2x4x256xf32>
    %30 = arith.mulf %27, %29 : vector<2x4x256xf32>
    %c0_14 = arith.constant 0 : index
    %c0_15 = arith.constant 0 : index
    %c0_16 = arith.constant 0 : index
    %31 = vector.load %arg4[%c0_14, %c0_15, %c0_16] : memref<2x4x256xf32, #tpu.memory_space<vmem>>, vector<2x4x256xf32>
    tpu.vector_store %arg4[%c0_14, %c0_15, %c0_16], %30 {strides = array<i32>} : memref<2x4x256xf32, #tpu.memory_space<vmem>>, vector<2x4x256xf32>,
    return
  }
  func.func @transform_0(%arg0: i32) -> (i32, i32, i32) {
    %c0_i32 = arith.constant 0 : i32
    %c0_i32_0 = arith.constant 0 : i32
    %c0_i32_1 = arith.constant 0 : i32
    return %arg0, %c0_i32, %c0_i32_0 : i32, i32, i32
  }
  func.func @transform_1(%arg0: i32) -> (i32, i32) {
    %c0_i32 = arith.constant 0 : i32
    %c0_i32_0 = arith.constant 0 : i32
    %c0_i32_1 = arith.constant 0 : i32
    return %c0_i32, %c0_i32_0 : i32, i32
  }
  func.func @transform_2(%arg0: i32) -> (i32, i32) {
    %c0_i32 = arith.constant 0 : i32
    %c0_i32_0 = arith.constant 0 : i32
    %c0_i32_1 = arith.constant 0 : i32
    return %c0_i32, %c0_i32_0 : i32, i32
  }
  func.func @transform_3(%arg0: i32) -> (i32, i32, i32) {
    %c0_i32 = arith.constant 0 : i32
    %c0_i32_0 = arith.constant 0 : i32
    %c0_i32_1 = arith.constant 0 : i32
    return %arg0, %c0_i32, %c0_i32_0 : i32, i32, i32
  }
}

</mosaic_0001>

<llo_original>
// kernel: tpu_custom_call.1
$region0: #{tpu_custom_call.1}
  #allocation0 [shape = 'u32[]', space=smem, size = 0x4, offset = 0x4, fixed_abs, tag = 'smem constant byte address 0x4 - core index']
  #allocation1 [shape = 'u32[144,128]{1,0:T(1,128)}', space=vmem, size = 0x12000, scoped, tag = 'internal scratch']
  %s0 = inlined_call_operand.hbm [shape: f32[2,4,256], index: 0, kind: input, shape index: {}]
  %s1 = inlined_call_operand.hbm [shape: f32[4,4], index: 1, kind: input, shape index: {}]
  %s2 = inlined_call_operand.vmem [shape: f32[1,4], index: 2, kind: input, shape index: {}]
  %s3 = inlined_call_operand.hbm [shape: f32[2,4,256], index: 3, kind: output, shape index: {}]
  %s4 = sld [smem:[#allocation0]]
  $region30: #{tpu_custom_call.1} parent=0
    _
  %s6 = ssub.s32 1, %s4
  %s7 = scalar_select 0, %s6, %s4
  $region1: #{tpu_custom_call.1} parent=0
    #allocation2 [shape = 'u8[8192]{0}', space=vmem, size = 0x2000, scoped, tag = 'input window, operand 0, single buffered']
    #allocation3 [shape = 's32[1]{0}', space=sflag, size = 0x4, scoped, tag = 'scoped memory for tpu_custom_call.1']
    #allocation4 [shape = 's32[1]{0}', space=sflag, size = 0x4, scoped, tag = 'scoped memory for tpu_custom_call.1']
    #allocation5 [shape = 'u8[2048]{0}', space=vmem, size = 0x800, scoped, tag = 'input window, operand 1, single buffered']
    #allocation6 [shape = 's32[1]{0}', space=sflag, size = 0x4, scoped, tag = 'scoped memory for tpu_custom_call.1']
    #allocation7 [shape = 'u8[8192]{0}', space=vmem, size = 0x2000, scoped, tag = 'output window, operand 0, single buffered']
    %8 = vsyncpa [#allocation3], 0
    %9 = vsyncpa [#allocation6], 0
    %10 = vsyncpa [#allocation4], 0
    // Predicated region
    $region2: #{tpu_custom_call.1} parent=1 // pred_check
      _
    $region3: #{tpu_custom_call.1} parent=1 // pred_check_branch
      %12 = sbr.rel (0) target = $region5
    $region4: #{tpu_custom_call.1} parent=1 // pred_region
      %s14 = ssub.s32 256, 256
      %15 = vsyncadd [#allocation3], %s14
      %s16 = sshll.u32 [#allocation2], 4
      %s17 = int_to_ptr.vmem [resolvable:$true] %s16
      %22 = dma.hbm_to_vmem [thread:$0]  %s0, 256, %s17, [#allocation3], 128, 128, 8
    $region5: #{tpu_custom_call.1} parent=1 // pred_fallthru
      _
    // Predicated region
    $region6: #{tpu_custom_call.1} parent=1 // pred_check
      _
    $region7: #{tpu_custom_call.1} parent=1 // pred_check_branch
      %24 = sbr.rel (0) target = $region9
    $region8: #{tpu_custom_call.1} parent=1 // pred_region
      %s26 = ssub.s32 64, 64
      %27 = vsyncadd [#allocation6], %s26
      %s29 = sshll.u32 [#allocation5], 4
      %s30 = int_to_ptr.vmem [resolvable:$true] %s29
      %32 = dma.hbm_to_vmem [thread:$0]  %s1, 64, %s30, [#allocation6]
    $region9: #{tpu_custom_call.1} parent=1 // pred_fallthru
      _
    // Predicated region
    $region10: #{tpu_custom_call.1} parent=1 // pred_check
      _
    $region11: #{tpu_custom_call.1} parent=1 // pred_check_branch
      %34 = sbr.rel (0) target = $region13
    $region12: #{tpu_custom_call.1} parent=1 // pred_region
      _
    $region13: #{tpu_custom_call.1} parent=1 // pred_fallthru
      _
    // Predicated region
    $region14: #{tpu_custom_call.1} parent=1 // pred_check
      _
    $region15: #{tpu_custom_call.1} parent=1 // pred_check_branch
      %36 = sbr.rel (0) target = $region17
    $region16: #{tpu_custom_call.1} parent=1 // pred_region
      %37 = dma.done [#allocation3], 256
    $region17: #{tpu_custom_call.1} parent=1 // pred_fallthru
      _
    // Predicated region
    $region18: #{tpu_custom_call.1} parent=1 // pred_check
      _
    $region19: #{tpu_custom_call.1} parent=1 // pred_check_branch
      %39 = sbr.rel (0) target = $region21
    $region20: #{tpu_custom_call.1} parent=1 // pred_region
      %40 = dma.done [#allocation6], 64
    $region21: #{tpu_custom_call.1} parent=1 // pred_fallthru
      _
    %v41 = vld [vmem:[#allocation2] sm:$0xf]
    %v42 = vld [vmem:[#allocation2 + $0x8] sm:$0xf]
    %s43 = scalar_lea.vmem [#allocation2], 4
    %v44 = vld [vmem:[%s43] sm:$0xf]
    %v45 = vld [vmem:[%s43 + $0x8] sm:$0xf]
    %v46 = vmax.f32 %v41, %v44
    %v47 = vmax.f32 %v42, %v45
    %vm48 = vcmask 1043456
    %v49 = vsel %vm48, %v46, -inf
    %50 = vmax.xlane.f32.xlu0 %v49
    %v51 = vpop.xlane.xlu0 %50
    %v52 = vsel %vm48, %v47, -inf
    %53 = vmax.xlane.f32.xlu0 %v52
    %v54 = vpop.xlane.xlu0 %53
    %v55 = vxor.u32 %v51, 2147483648
    %v56 = vxor.u32 %v54, 2147483648
    %v57 = vmul.f32 %v55, 1.442695
    %v58 = vpow.pop %v57
    %v59 = vmul.f32 %v56, 1.442695
    %v60 = vpow.pop %v59
    %v61 = vadd.f32 %v58, 1.0
    %v62 = vadd.f32 %v60, 1.0
    %v63 = vrcp.pop %v61
    %v64 = vmul.f32 1.0, %v63
    %v65 = vrcp.pop %v62
    %v66 = vmul.f32 1.0, %v65
    %v67 = vld [vmem:[#allocation5] sm:$0xf]
    %v68 = vld [vmem:[%s2] sm:$0x1]
    %v70 = vlaneseq
    %v71 = vshrl.u32 %v70, 7
    %v72 = vsub.s32 0, %v71
    %v73 = vrot.slane %v67, %v72
    %75 = vbcast.lane.b32.xlu0 %v73, 256
    %v76 = vpop.permute.xlu0 %75
    %v77 = vlaneseq
    %v78 = vshrl.u32 %v77, 7
    %v79 = vsub.s32 1, %v78
    %v80 = vrot.slane %v67, %v79
    %82 = vbcast.lane.b32.xlu0 %v80, 256
    %v83 = vpop.permute.xlu0 %82
    %v84 = vlaneseq
    %v85 = vshrl.u32 %v84, 7
    %v86 = vsub.s32 2, %v85
    %v87 = vrot.slane %v67, %v86
    %89 = vbcast.lane.b32.xlu0 %v87, 256
    %v90 = vpop.permute.xlu0 %89
    %v91 = vlaneseq
    %v92 = vshrl.u32 %v91, 7
    %v93 = vsub.s32 3, %v92
    %v94 = vrot.slane %v67, %v93
    %96 = vbcast.lane.b32.xlu0 %v94, 256
    %v97 = vpop.permute.xlu0 %96
    %v102 = vmul.f32 %v64, %v76
    %v103 = vmul.f32 %v64, %v83
    %v104 = vmul.f32 %v64, %v90
    %v105 = vmul.f32 %v64, %v97
    %v106 = vmul.f32 %v66, %v76
    %v107 = vmul.f32 %v66, %v83
    %v108 = vmul.f32 %v66, %v90
    %v109 = vmul.f32 %v66, %v97
    %118 = vset.pattern.permute.xlu0 0
    %119 = vperm.xlu0 %118, %v102
    %v120 = vpop.permute.xlu0 %119
    %121 = vset.pattern.permute.xlu0 0
    %122 = vperm.xlu0 %121, %v103
    %v123 = vpop.permute.xlu0 %122
    %124 = vset.pattern.permute.xlu0 0
    %125 = vperm.xlu0 %124, %v104
    %v126 = vpop.permute.xlu0 %125
    %127 = vset.pattern.permute.xlu0 0
    %128 = vperm.xlu0 %127, %v105
    %v129 = vpop.permute.xlu0 %128
    %130 = vset.pattern.permute.xlu0 0
    %131 = vperm.xlu0 %130, %v106
    %v132 = vpop.permute.xlu0 %131
    %133 = vset.pattern.permute.xlu0 0
    %134 = vperm.xlu0 %133, %v107
    %v135 = vpop.permute.xlu0 %134
    %136 = vset.pattern.permute.xlu0 0
    %137 = vperm.xlu0 %136, %v108
    %v138 = vpop.permute.xlu0 %137
    %139 = vset.pattern.permute.xlu0 0
    %140 = vperm.xlu0 %139, %v109
    %v141 = vpop.permute.xlu0 %140
    %v142 = vlaneseq
    %v143 = vand.u32 %v142, 127
    %v144 = vlaneseq
    %v145 = vshrl.u32 %v144, 7
    %v146 = vsub.s32 %v143, %v145
    %v147 = vrot.slane %v120, %v146
    %v148 = vlaneseq
    %v149 = vshrl.u32 %v148, 7
    %v150 = vsub.s32 %v143, %v149
    %v151 = vrot.slane %v123, %v150
    %v152 = vlaneseq
    %v153 = vshrl.u32 %v152, 7
    %v154 = vsub.s32 %v143, %v153
    %v155 = vrot.slane %v126, %v154
    %v156 = vlaneseq
    %v157 = vshrl.u32 %v156, 7
    %v158 = vsub.s32 %v143, %v157
    %v159 = vrot.slane %v129, %v158
    %v160 = vlaneseq
    %v161 = vshrl.u32 %v160, 7
    %v162 = vsub.s32 %v143, %v161
    %v163 = vrot.slane %v132, %v162
    %v164 = vlaneseq
    %v165 = vshrl.u32 %v164, 7
    %v166 = vsub.s32 %v143, %v165
    %v167 = vrot.slane %v135, %v166
    %v168 = vlaneseq
    %v169 = vshrl.u32 %v168, 7
    %v170 = vsub.s32 %v143, %v169
    %v171 = vrot.slane %v138, %v170
    %v172 = vlaneseq
    %v173 = vshrl.u32 %v172, 7
    %v174 = vsub.s32 %v143, %v173
    %v175 = vrot.slane %v141, %v174
    %vm176 = vcmask 1041409
    %v177 = vsel %vm176, %v151, %v147
    %vm178 = vcmask 1042434
    %v179 = vsel %vm178, %v155, %v177
    %vm180 = vcmask 1043459
    %v181 = vsel %vm180, %v159, %v179
    %v182 = vsel %vm176, %v167, %v163
    %v183 = vsel %vm178, %v171, %v182
    %v184 = vsel %vm180, %v175, %v183
    %vm187 = vcmask 27648
    %v188 = vsel %vm187, %v181, 0.0
    %189 = vadd.xlane.f32.xlu0 %v188
    %v190 = vpop.xlane.xlu0 %189
    %v191 = vsel %vm187, %v184, 0.0
    %192 = vadd.xlane.f32.xlu0 %v191
    %v193 = vpop.xlane.xlu0 %192
    %v195 = vlaneseq
    %v196 = vshrl.u32 %v195, 7
    %v197 = vsub.s32 0, %v196
    %v198 = vrot.slane %v68, %v197
    %200 = vbcast.lane.b32.xlu0 %v198, 256
    %v201 = vpop.permute.xlu0 %200
    %v203 = vadd.f32 %v190, %v201
    %v204 = vadd.f32 %v193, %v201
    %v205 = vld [vmem:[#allocation2] sm:$0xff]
    %v206 = vld [vmem:[#allocation2 + $0x8] sm:$0xff]
    %208 = vset.pattern.permute.xlu0 0
    %209 = vperm.xlu0 %208, %v203
    %v210 = vpop.permute.xlu0 %209
    %212 = vset.pattern.permute.xlu0 0
    %213 = vperm.xlu0 %212, %v204
    %v214 = vpop.permute.xlu0 %213
    %v216 = vunpack.c.l.s4 839922192
    %v217 = vunpack.c.0.s8 %v216
    %v218 = vlaneseq
    %v219 = vshrl.u32 %v218, 7
    %v220 = vsub.s32 %v217, %v219
    %v221 = vrot.slane %v210, %v220
    %v223 = vunpack.c.l.s4 839922192
    %v224 = vunpack.c.0.s8 %v223
    %v225 = vlaneseq
    %v226 = vshrl.u32 %v225, 7
    %v227 = vsub.s32 %v224, %v226
    %v228 = vrot.slane %v214, %v227
    %v231 = vmul.f32 %v205, %v221
    %v232 = vmul.f32 %v206, %v228
    %233 = vst [vmem:[#allocation7] sm:$0xff] %v231
    %234 = vst [vmem:[#allocation7 + $0x8] sm:$0xff] %v232
    // Predicated region
    $region22: #{tpu_custom_call.1} parent=1 // pred_check
      _
    $region23: #{tpu_custom_call.1} parent=1 // pred_check_branch
      %236 = sbr.rel (0) target = $region25
    $region24: #{tpu_custom_call.1} parent=1 // pred_region
      %s238 = ssub.s32 256, 256
      %239 = vsyncadd [#allocation4], %s238
      %s240 = sshll.u32 [#allocation7], 4
      %s241 = int_to_ptr.vmem [resolvable:$true] %s240
      %246 = dma.vmem_to_hbm [thread:$0]  %s241, 256, %s3, [#allocation4], 128, 128, 8
    $region25: #{tpu_custom_call.1} parent=1 // pred_fallthru
      _
    // Predicated region
    $region26: #{tpu_custom_call.1} parent=1 // pred_check
      _
    $region27: #{tpu_custom_call.1} parent=1 // pred_check_branch
      %248 = sbr.rel (0) target = $region29
    $region28: #{tpu_custom_call.1} parent=1 // pred_region
      %249 = dma.done [#allocation4], 256
    $region29: #{tpu_custom_call.1} parent=1 // pred_fallthru
      _
    %250 = vsyncpa [#allocation3], 1
    %251 = vsyncpa [#allocation6], 1
    %252 = vsyncpa [#allocation4], 1

</llo_original>
